<compile_context>
chip_gen: v7x
topology: tpu7x:2x2x1
jax: 0.10.0
libtpu: 0.0.40
codegen_flags: <defaults>
</compile_context>

<pallas_src>
import functools

import jax
import jax.numpy as jnp
from jax.experimental import pallas as pl
from jax.experimental.pallas import tpu as pltpu


def _reward_predictor_kernel(x_ref, w1_ref, b1_ref, w2_ref, b2_ref, w3_ref, b3_ref,
                             o_ref, *, lane_chunk, n_chunks):
    # Hoist the resident (tiny) operands out of the chunk loop: they stay in a handful
    # of vregs and we avoid re-issuing broadcast/layout ops per chunk (JAX does not
    # CSE broadcast_in_dim).
    w1 = w1_ref[...]            # (64, d_in)  compute dtype
    w2 = w2_ref[...]            # (32, 64)    compute dtype
    w3 = w3_ref[...]            # (32, 1)     f32
    b1 = b1_ref[...]            # (64, 1)     f32
    b2 = b2_ref[...]            # (32, 1)     f32
    b3 = b3_ref[...]            # (1, 1)      f32

    def chunk(start):
        xc = x_ref[:, pl.ds(start, lane_chunk)]                     # (d_in, LC)
        # Layer 1: MXU matmul, f32 accumulation; bias + ReLU on the VPU in f32, then
        # cast to the compute dtype *before* the value leaves vregs.
        h1 = jnp.dot(w1, xc, preferred_element_type=jnp.float32) + b1
        h1 = jnp.maximum(h1, 0.0).astype(w2.dtype)                  # (64, LC)
        # Layer 2.
        h2 = jnp.dot(w2, h1, preferred_element_type=jnp.float32) + b2
        h2 = jnp.maximum(h2, 0.0)                                   # (32, LC) f32
        # Layer 3 (32 -> 1): broadcast-mul + sublane reduce on VPU/XLU (an M=1 MXU
        # call would waste the systolic array; the XLU slot is otherwise idle here).
        h3 = jnp.sum(w3 * h2, axis=0, keepdims=True) + b3           # (1, LC) f32
        # Lane-dense sigmoid (EUP) + unmasked lane-dense store.
        o_ref[:, pl.ds(start, lane_chunk)] = jax.nn.sigmoid(h3).astype(o_ref.dtype)

    if n_chunks <= 8:
        # Short loop: full static unroll so the LLO scheduler sees the whole chain.
        for c in range(n_chunks):
            chunk(c * lane_chunk)
    else:
        @pl.loop(0, n_chunks)
        def _(c):
            chunk(pl.multiple_of(c * lane_chunk, lane_chunk))


def _choose_tiling(B, block_b):
    """Pick (tb, b_pad, grid_steps, lane_chunk) with bounded padding waste."""
    b128 = pl.cdiv(B, 128) * 128            # pad batch to a lane multiple only
    n128 = b128 // 128
    tgt_groups = max(1, min(block_b, b128) // 128)
    g = pl.cdiv(n128, tgt_groups)           # grid steps implied by block_b
    g = max(g, min(4, n128))                # >=4 steps when possible: 2 per TC on v7x
                                            # + DMA/compute overlap everywhere
    groups = pl.cdiv(n128, g)
    if groups >= 4:
        groups = pl.cdiv(groups, 4) * 4     # make tb a multiple of 512 for the chunks
    tb = groups * 128
    b_pad = g * tb                          # waste < g*128 + 127 rows total
    lane_chunk = next(c for c in (512, 256, 128) if tb % c == 0)
    return tb, b_pad, g, lane_chunk


def reward_predictor(x, params, *, block_b=16384, compute_dtype=jnp.bfloat16):
    """x: [B, obs_size + act_size] -> [B, 1] float32 (matches the PyTorch module).

    block_b: target batch rows per grid step.  16-32K is a good range on all current
    generations; the on-chip intermediates are sub-tiled so only the x/out tiles scale
    with it (v7x note: VMEM there is 64 MiB -- *half* of v5e/v6e -- but even 32K-row
    bf16 tiles stay under ~2.5 MiB double-buffered, so the cap below is generous).
    compute_dtype: dtype fed to the MXU for x / W1 / W2 / h1.  bf16 (default) halves
    the on-chip operand vregs and vld/vst traffic; jnp.float32 gives exact parity.
    """
    w1, b1, w2, b2, w3, b3 = params
    B, d_in = x.shape
    h1d, h2d, h3d = w1.shape[1], w2.shape[1], w3.shape[1]
    assert h3d == 1
    if compute_dtype is None:
        compute_dtype = jnp.float32
    cdt = jnp.dtype(compute_dtype)
    isz = cdt.itemsize

    tb, b_pad, grid_steps, lane_chunk = _choose_tiling(B, block_b)
    n_chunks = tb // lane_chunk

    # ---- wrapper-side layout plumbing (one fused cast+transpose+pad pass over x;
    # weights are tiny). ----
    xt = x.astype(cdt).T                                   # (d_in, B), batch on lanes
    if b_pad != B:
        xt = jnp.pad(xt, ((0, 0), (0, b_pad - B)))         # zero cols: harmless, sliced off

    w1t = w1.T.astype(cdt)                                 # (h1d, d_in)
    w2t = w2.T.astype(cdt)                                 # (h2d, h1d)
    w3c = w3.astype(jnp.float32)                           # (h2d, 1), stays f32
    b1c = b1.reshape(h1d, 1).astype(jnp.float32)
    b2c = b2.reshape(h2d, 1).astype(jnp.float32)
    b3c = b3.reshape(1, 1).astype(jnp.float32)

    const = lambda shape: pl.BlockSpec(shape, lambda i: (0, 0))   # resident operands

    resident_bytes = (w1t.size + w2t.size) * isz + 4 * (w3c.size + b1c.size + b2c.size + b3c.size)
    # Double-buffered x tile + out tile + resident operands + headroom for Mosaic scratch.
    vmem_bytes = 2 * (d_in * tb * isz + tb * 4) + 2 * resident_bytes + (4 << 20)
    vmem_limit = int(min(48 << 20, max(16 << 20, vmem_bytes)))

    flops = 2 * B * (d_in * h1d + h1d * h2d + h2d * h3d)
    cost = pl.CostEstimate(
        flops=flops,
        transcendentals=2 * B,                              # sigmoid = exp + reciprocal
        bytes_accessed=B * d_in * isz + B * 4 + resident_bytes,
    )

    out = pl.pallas_call(
        functools.partial(_reward_predictor_kernel,
                          lane_chunk=lane_chunk, n_chunks=n_chunks),
        out_shape=jax.ShapeDtypeStruct((1, b_pad), jnp.float32),
        grid=(grid_steps,),
        in_specs=[
            pl.BlockSpec((d_in, tb), lambda i: (0, i)),     # x: streamed, double-buffered
            const((h1d, d_in)), const((h1d, 1)),            # layer-1 weight / bias
            const((h2d, h1d)), const((h2d, 1)),             # layer-2 weight / bias
            const((h2d, 1)), const((1, 1)),                 # layer-3 weight (column) / bias
        ],
        out_specs=pl.BlockSpec((1, tb), lambda i: (0, i)),  # lane-dense output slab
        compiler_params=pltpu.CompilerParams(
            dimension_semantics=("parallel",),              # megacore: split batch tiles
            vmem_limit_bytes=vmem_limit,
        ),
        cost_estimate=cost,
    )(xt, w1t, b1c, w2t, b2c, w3c, b3c)

    # (1, b_pad) -> (b_pad, 1) is a contiguous reshape (free), then drop the padding.
    return out.reshape(b_pad, 1)[:B]


def init_params(key, obs_size, act_size):
    """Deterministic init matching the PyTorch layer shapes (uniform +-1/sqrt(fan_in))."""
    d_in = obs_size + act_size
    dims = [(d_in, 64), (64, 32), (32, 1)]
    params = []
    for (fi, fo) in dims:
        key, kw, kb = jax.random.split(key, 3)
        bound = 1.0 / jnp.sqrt(jnp.float32(fi))
        w = jax.random.uniform(kw, (fi, fo), jnp.float32, -bound, bound)
        b = jax.random.uniform(kb, (1, fo), jnp.float32, -bound, bound)
        params += [w, b]
    return tuple(params)


def reference(x, params):
    w1, b1, w2, b2, w3, b3 = params
    h = jnp.maximum(x @ w1 + b1, 0.0)
    h = jnp.maximum(h @ w2 + b2, 0.0)
    return jax.nn.sigmoid(h @ w3 + b3)


# TODO(synk): load_model() (.pth checkpoint I/O) has no Pallas equivalent; params are passed in.

if __name__ == "__main__":
    obs_size, act_size = 12, 4
    key = jax.random.PRNGKey(0)
    key, kx1, kx2, kx3 = jax.random.split(key, 4)
    params = init_params(key, obs_size, act_size)

    # Case 1: f32 exact-parity path; B=384 -> 3-step pipelined grid (tiles of 128).
    x1 = jax.random.normal(kx1, (384, obs_size + act_size), jnp.float32)
    out1 = jax.block_until_ready(reward_predictor(x1, params, compute_dtype=jnp.float32))
    ref1 = reference(x1, params)
    assert out1.shape == (384, 1)
    assert jnp.allclose(out1, ref1, atol=1e-4, rtol=1e-4), "f32 path mismatch"

    # Case 2: ragged tiny batch (single padded tile), default bf16 MXU operands.
    x2 = jax.random.normal(kx2, (50, obs_size + act_size), jnp.float32)
    out2 = jax.block_until_ready(reward_predictor(x2, params))
    ref2 = reference(x2, params)
    assert out2.shape == (50, 1)
    assert jnp.allclose(out2, ref2, atol=2e-2, rtol=2e-2), "bf16 path mismatch"

    # Case 3: ragged batch across a multi-step grid (last tile partially padded), bf16.
    x3 = jax.random.normal(kx3, (333, obs_size + act_size), jnp.float32)
    out3 = jax.block_until_ready(reward_predictor(x3, params))
    ref3 = reference(x3, params)
    assert out3.shape == (333, 1)
    assert jnp.allclose(out3, ref3, atol=2e-2, rtol=2e-2), "bf16 padded-grid mismatch"

    print("KERNEL_OK")
</pallas_src>

<mosaic_0001>
module attributes {stable_mosaic.version = 11 : i64} {
  func.func @_reward_predictor_kernel(%arg0: i32, %arg1: memref<16x128xf32, #tpu.memory_space<vmem>>, %arg2: memref<64x16xf32, #tpu.memory_space<vmem>>, %arg3: memref<64x1xf32, #tpu.memory_space<vmem>>, %arg4: memref<32x64xf32, #tpu.memory_space<vmem>>, %arg5: memref<32x1xf32, #tpu.memory_space<vmem>>, %arg6: memref<32x1xf32, #tpu.memory_space<vmem>>, %arg7: memref<1x1xf32, #tpu.memory_space<vmem>>, %arg8: memref<1x128xf32, #tpu.memory_space<vmem>>) attributes {dimension_semantics = [#tpu.dimension_semantics<parallel>], iteration_bounds = array<i64: 3>, scalar_prefetch = 0 : i64, scratch_operands = 0 : i64, tpu.core_type = #tpu.core_type<tc>, window_params = [{transform_indices = @transform_0, window_bounds = array<i64: 16, 128>}, {pipeline_mode = #tpu.pipeline_mode<synchronous>, transform_indices = @transform_1, window_bounds = array<i64: 64, 16>}, {pipeline_mode = #tpu.pipeline_mode<synchronous>, transform_indices = @transform_2, window_bounds = array<i64: 64, 1>}, {pipeline_mode = #tpu.pipeline_mode<synchronous>, transform_indices = @transform_3, window_bounds = array<i64: 32, 64>}, {pipeline_mode = #tpu.pipeline_mode<synchronous>, transform_indices = @transform_4, window_bounds = array<i64: 32, 1>}, {pipeline_mode = #tpu.pipeline_mode<synchronous>, transform_indices = @transform_5, window_bounds = array<i64: 32, 1>}, {pipeline_mode = #tpu.pipeline_mode<synchronous>, transform_indices = @transform_6, window_bounds = array<i64: 1, 1>}, {transform_indices = @transform_7, window_bounds = array<i64: 1, 128>}]} {
    %c0 = arith.constant 0 : index
    %c0_0 = arith.constant 0 : index
    %0 = vector.load %arg2[%c0, %c0_0] : memref<64x16xf32, #tpu.memory_space<vmem>>, vector<64x16xf32>
    %c0_1 = arith.constant 0 : index
    %c0_2 = arith.constant 0 : index
    %1 = vector.load %arg4[%c0_1, %c0_2] : memref<32x64xf32, #tpu.memory_space<vmem>>, vector<32x64xf32>
    %c0_3 = arith.constant 0 : index
    %c0_4 = arith.constant 0 : index
    %2 = vector.load %arg6[%c0_3, %c0_4] : memref<32x1xf32, #tpu.memory_space<vmem>>, vector<32x1xf32>
    %c0_5 = arith.constant 0 : index
    %c0_6 = arith.constant 0 : index
    %3 = vector.load %arg3[%c0_5, %c0_6] : memref<64x1xf32, #tpu.memory_space<vmem>>, vector<64x1xf32>
    %c0_7 = arith.constant 0 : index
    %c0_8 = arith.constant 0 : index
    %4 = vector.load %arg5[%c0_7, %c0_8] : memref<32x1xf32, #tpu.memory_space<vmem>>, vector<32x1xf32>
    %c0_9 = arith.constant 0 : index
    %c0_10 = arith.constant 0 : index
    %5 = vector.load %arg7[%c0_9, %c0_10] : memref<1x1xf32, #tpu.memory_space<vmem>>, vector<1x1xf32>
    %c0_11 = arith.constant 0 : index
    %c0_12 = arith.constant 0 : index
    %6 = vector.load %arg1[%c0_11, %c0_12] : memref<16x128xf32, #tpu.memory_space<vmem>>, vector<16x128xf32>
    %cst = arith.constant dense<0.000000e+00> : vector<64x128xf32>
    %7 = tpu.matmul %0, %6, %cst {dimension_numbers = #tpu.dot_dimension_numbers<[1], [0], [0], [1], [0, 0, 1, 1], [], []>} : vector<64x16xf32>, vector<16x128xf32>, vector<64x128xf32> -> vector<64x128xf32>
    %8 = vector.broadcast %3 : vector<64x1xf32> to vector<64x128xf32>
    %9 = arith.addf %7, %8 : vector<64x128xf32>
    %cst_13 = arith.constant 0.000000e+00 : f32
    %10 = vector.broadcast %cst_13 : f32 to vector<64x128xf32>
    %11 = arith.maximumf %9, %10 : vector<64x128xf32>
    %cst_14 = arith.constant dense<0.000000e+00> : vector<32x128xf32>
    %12 = tpu.matmul %1, %11, %cst_14 {dimension_numbers = #tpu.dot_dimension_numbers<[1], [0], [0], [1], [0, 0, 1, 1], [], []>} : vector<32x64xf32>, vector<64x128xf32>, vector<32x128xf32> -> vector<32x128xf32>
    %13 = vector.broadcast %4 : vector<32x1xf32> to vector<32x128xf32>
    %14 = arith.addf %12, %13 : vector<32x128xf32>
    %cst_15 = arith.constant 0.000000e+00 : f32
    %15 = vector.broadcast %cst_15 : f32 to vector<32x128xf32>
    %16 = arith.maximumf %14, %15 : vector<32x128xf32>
    %17 = vector.broadcast %2 : vector<32x1xf32> to vector<32x128xf32>
    %18 = arith.mulf %17, %16 : vector<32x128xf32>
    %cst_16 = arith.constant dense<0.000000e+00> : vector<128xf32>
    %19 = vector.multi_reduction <add>, %18, %cst_16 [0] : vector<32x128xf32> to vector<128xf32>
    %20 = vector.shape_cast %19 : vector<128xf32> to vector<1x128xf32>
    %21 = vector.broadcast %5 : vector<1x1xf32> to vector<1x128xf32>
    %22 = arith.addf %20, %21 : vector<1x128xf32>
    %23 = arith.negf %22 : vector<1x128xf32>
    %24 = math.exp %23 : vector<1x128xf32>
    %cst_17 = arith.constant 1.000000e+00 : f32
    %25 = vector.broadcast %cst_17 : f32 to vector<1x128xf32>
    %26 = arith.addf %25, %24 : vector<1x128xf32>
    %27 = arith.divf %25, %26 : vector<1x128xf32>
    %c0_18 = arith.constant 0 : index
    %c0_19 = arith.constant 0 : index
    %28 = vector.load %arg8[%c0_18, %c0_19] : memref<1x128xf32, #tpu.memory_space<vmem>>, vector<1x128xf32>
    tpu.vector_store %arg8[%c0_18, %c0_19], %27 {strides = array<i32>} : memref<1x128xf32, #tpu.memory_space<vmem>>, vector<1x128xf32>,
    return
  }
  func.func @transform_0(%arg0: i32) -> (i32, i32) {
    %c0_i32 = arith.constant 0 : i32
    %c0_i32_0 = arith.constant 0 : i32
    return %c0_i32, %arg0 : i32, i32
  }
  func.func @transform_1(%arg0: i32) -> (i32, i32) {
    %c0_i32 = arith.constant 0 : i32
    %c0_i32_0 = arith.constant 0 : i32
    %c0_i32_1 = arith.constant 0 : i32
    return %c0_i32, %c0_i32_0 : i32, i32
  }
  func.func @transform_2(%arg0: i32) -> (i32, i32) {
    %c0_i32 = arith.constant 0 : i32
    %c0_i32_0 = arith.constant 0 : i32
    %c0_i32_1 = arith.constant 0 : i32
    return %c0_i32, %c0_i32_0 : i32, i32
  }
  func.func @transform_3(%arg0: i32) -> (i32, i32) {
    %c0_i32 = arith.constant 0 : i32
    %c0_i32_0 = arith.constant 0 : i32
    %c0_i32_1 = arith.constant 0 : i32
    return %c0_i32, %c0_i32_0 : i32, i32
  }
  func.func @transform_4(%arg0: i32) -> (i32, i32) {
    %c0_i32 = arith.constant 0 : i32
    %c0_i32_0 = arith.constant 0 : i32
    %c0_i32_1 = arith.constant 0 : i32
    return %c0_i32, %c0_i32_0 : i32, i32
  }
  func.func @transform_5(%arg0: i32) -> (i32, i32) {
    %c0_i32 = arith.constant 0 : i32
    %c0_i32_0 = arith.constant 0 : i32
    %c0_i32_1 = arith.constant 0 : i32
    return %c0_i32, %c0_i32_0 : i32, i32
  }
  func.func @transform_6(%arg0: i32) -> (i32, i32) {
    %c0_i32 = arith.constant 0 : i32
    %c0_i32_0 = arith.constant 0 : i32
    %c0_i32_1 = arith.constant 0 : i32
    return %c0_i32, %c0_i32_0 : i32, i32
  }
  func.func @transform_7(%arg0: i32) -> (i32, i32) {
    %c0_i32 = arith.constant 0 : i32
    %c0_i32_0 = arith.constant 0 : i32
    return %c0_i32, %arg0 : i32, i32
  }
}

</mosaic_0001>

<llo_original>
// kernel: tpu_custom_call.1
$region0: #{tpu_custom_call.1}
  #allocation0 [shape = 'u32[]', space=smem, size = 0x4, offset = 0x4, fixed_abs, tag = 'smem constant byte address 0x4 - core index']
  #allocation1 [shape = 'u32[144,128]{1,0:T(1,128)}', space=vmem, size = 0x12000, scoped, tag = 'internal scratch']
  #allocation2 [shape = 'f32[1,1]{1,0:T(1,128)S(1)}', space=vmem, size = 0x200, scoped, tag = 'scoped memory for tpu_custom_call.1']
  %s0 = inlined_call_operand.vmem [shape: f32[16,384], index: 0, kind: input, shape index: {}]
  %s1 = inlined_call_operand.vmem [shape: f32[64,16], index: 1, kind: input, shape index: {}]
  %s2 = inlined_call_operand.vmem [shape: f32[64,1], index: 2, kind: input, shape index: {}]
  %s3 = inlined_call_operand.vmem [shape: f32[32,64], index: 3, kind: input, shape index: {}]
  %s4 = inlined_call_operand.vmem [shape: f32[32,1], index: 4, kind: input, shape index: {}]
  %s5 = inlined_call_operand.vmem [shape: f32[32,1], index: 5, kind: input, shape index: {}]
  %s6 = inlined_call_operand.<no memory space> [shape: f32[1,1], index: 6, kind: input, shape index: {}]
  %s7 = inlined_call_operand.hbm [shape: f32[1,384], index: 7, kind: output, shape index: {}]
  %s8 = sld [smem:[#allocation0]]
  $region99: #{tpu_custom_call.1} parent=0
    _
  %s10 = ssub.s32 1, %s8
  %s11 = scalar_select 0, %s10, %s8
  %v12 = vstv %s6
  %13 = vst [vmem:[#allocation2] sm:$0x1] %v12
  $region1: #{tpu_custom_call.1} parent=0
    #allocation3 [shape = 'u8[16384]{0}', space=vmem, size = 0x4000, scoped, tag = 'input window, operand 0']
    #allocation4 [shape = 'u8[1024]{0}', space=vmem, size = 0x400, scoped, tag = 'output window, operand 0']
    #allocation5 [shape = 's32[2]{0}', space=sflag, size = 0x8, scoped, tag = 'scoped memory for tpu_custom_call.1']
    %14 = vsyncpa [#allocation5], 0
    %s15 = scalar_lea.sflag [#allocation5], 1
    %16 = vsyncpa %s15, 0
    loop: start=0, step=1, limit=5
    $region2: #{tpu_custom_call.1} parent=1 // loop_pre_header
      _
    $region3: #{tpu_custom_call.1} parent=1 // loop_header
      %s18 = sphi 0, %s22
      %p19 = scmp.ge.s32.totalorder %s18, 5
      %s28 = sphi 0, %s30
      %s31 = sphi 0, %s28
      %s32 = sphi 0, %s31
      %s48 = sphi 0, %s32
      %s52 = sphi 0, %s52
      %s54 = sphi 0, %s52
      %s55 = sphi 0, %s54
      %s69 = sphi 0, %s55
      %s73 = sphi 0, %s73
      %s75 = sphi 0, %s73
      %s76 = sphi 0, %s75
      %s90 = sphi 0, %s76
      %s94 = sphi 0, %s94
      %s96 = sphi 0, %s94
      %s97 = sphi 0, %s96
      %s111 = sphi 0, %s97
      %s115 = sphi 0, %s115
      %s117 = sphi 0, %s115
      %s118 = sphi 0, %s117
      %s132 = sphi 0, %s118
      %s136 = sphi 0, %s136
      %s138 = sphi 0, %s136
      %s139 = sphi 0, %s138
      %s153 = sphi 0, %s139
      %s157 = sphi 0, %s157
      %s159 = sphi 0, %s157
      %s160 = sphi 0, %s159
      %s174 = sphi 0, %s160
      %s180 = sphi 0, %s182
      %s183 = sphi 0, %s180
      %s184 = sphi 0, %s183
      %s200 = sphi 0, %s184
    $region4: #{tpu_custom_call.1} parent=1 // loop_header_branch
      %21 = sbr.rel (%p19) target = $region8
    $region5: #{tpu_custom_call.1} parent=1 // loop_body
      %s23 = ssub.s32 %s18, 1
      %s24 = ssub.s32 %s18, 2
      %s25 = sadd.s32 %s18, 1
      %s26 = ssub.s32 %s18, %s25
      %p27 = scmp.eq.s32.totalorder %s26, 0
      %s29 = sadd.s32 %s28, 1
      %s30 = scalar_select %p27, %s28, %s29
      %p33 = pneg %p27
      %p34 = scmp.eq.s32.totalorder %s18, 2
      %p35 = por %p33, %p34
      %p36 = scmp.ne.s32.totalorder %s28, %s31
      %p37 = scmp.eq.s32.totalorder %s18, 0
      %p38 = por %p36, %p37
      %p39 = scmp.ne.s32.totalorder %s28, %s31
      %p40 = scmp.eq.s32.totalorder %s23, 2
      %p41 = por %p39, %p40
      %p42 = scmp.ne.s32.totalorder %s31, %s32
      %p43 = scmp.eq.s32.totalorder %s23, 0
      %p44 = por %p42, %p43
      %p45 = scmp.ne.s32.totalorder %s31, %s32
      %p46 = scmp.eq.s32.totalorder %s24, 2
      %p47 = por %p45, %p46
      %p49 = scmp.ne.s32.totalorder %s32, %s48
      %p50 = scmp.eq.s32.totalorder %s24, 0
      %p51 = por %p49, %p50
      %s53 = sadd.s32 %s52, 1
      %p56 = scmp.eq.s32.totalorder %s18, 2
      %p57 = scmp.ne.s32.totalorder %s52, %s54
      %p58 = scmp.eq.s32.totalorder %s18, 0
      %p59 = por %p57, %p58
      %p60 = scmp.ne.s32.totalorder %s52, %s54
      %p61 = scmp.eq.s32.totalorder %s23, 2
      %p62 = por %p60, %p61
      %p63 = scmp.ne.s32.totalorder %s54, %s55
      %p64 = scmp.eq.s32.totalorder %s23, 0
      %p65 = por %p63, %p64
      %p66 = scmp.ne.s32.totalorder %s54, %s55
      %p67 = scmp.eq.s32.totalorder %s24, 2
      %p68 = por %p66, %p67
      %p70 = scmp.ne.s32.totalorder %s55, %s69
      %p71 = scmp.eq.s32.totalorder %s24, 0
      %p72 = por %p70, %p71
      %s74 = sadd.s32 %s73, 1
      %p77 = scmp.eq.s32.totalorder %s18, 2
      %p78 = scmp.ne.s32.totalorder %s73, %s75
      %p79 = scmp.eq.s32.totalorder %s18, 0
      %p80 = por %p78, %p79
      %p81 = scmp.ne.s32.totalorder %s73, %s75
      %p82 = scmp.eq.s32.totalorder %s23, 2
      %p83 = por %p81, %p82
      %p84 = scmp.ne.s32.totalorder %s75, %s76
      %p85 = scmp.eq.s32.totalorder %s23, 0
      %p86 = por %p84, %p85
      %p87 = scmp.ne.s32.totalorder %s75, %s76
      %p88 = scmp.eq.s32.totalorder %s24, 2
      %p89 = por %p87, %p88
      %p91 = scmp.ne.s32.totalorder %s76, %s90
      %p92 = scmp.eq.s32.totalorder %s24, 0
      %p93 = por %p91, %p92
      %s95 = sadd.s32 %s94, 1
      %p98 = scmp.eq.s32.totalorder %s18, 2
      %p99 = scmp.ne.s32.totalorder %s94, %s96
      %p100 = scmp.eq.s32.totalorder %s18, 0
      %p101 = por %p99, %p100
      %p102 = scmp.ne.s32.totalorder %s94, %s96
      %p103 = scmp.eq.s32.totalorder %s23, 2
      %p104 = por %p102, %p103
      %p105 = scmp.ne.s32.totalorder %s96, %s97
      %p106 = scmp.eq.s32.totalorder %s23, 0
      %p107 = por %p105, %p106
      %p108 = scmp.ne.s32.totalorder %s96, %s97
      %p109 = scmp.eq.s32.totalorder %s24, 2
      %p110 = por %p108, %p109
      %p112 = scmp.ne.s32.totalorder %s97, %s111
      %p113 = scmp.eq.s32.totalorder %s24, 0
      %p114 = por %p112, %p113
      %s116 = sadd.s32 %s115, 1
      %p119 = scmp.eq.s32.totalorder %s18, 2
      %p120 = scmp.ne.s32.totalorder %s115, %s117
      %p121 = scmp.eq.s32.totalorder %s18, 0
      %p122 = por %p120, %p121
      %p123 = scmp.ne.s32.totalorder %s115, %s117
      %p124 = scmp.eq.s32.totalorder %s23, 2
      %p125 = por %p123, %p124
      %p126 = scmp.ne.s32.totalorder %s117, %s118
      %p127 = scmp.eq.s32.totalorder %s23, 0
      %p128 = por %p126, %p127
      %p129 = scmp.ne.s32.totalorder %s117, %s118
      %p130 = scmp.eq.s32.totalorder %s24, 2
      %p131 = por %p129, %p130
      %p133 = scmp.ne.s32.totalorder %s118, %s132
      %p134 = scmp.eq.s32.totalorder %s24, 0
      %p135 = por %p133, %p134
      %s137 = sadd.s32 %s136, 1
      %p140 = scmp.eq.s32.totalorder %s18, 2
      %p141 = scmp.ne.s32.totalorder %s136, %s138
      %p142 = scmp.eq.s32.totalorder %s18, 0
      %p143 = por %p141, %p142
      %p144 = scmp.ne.s32.totalorder %s136, %s138
      %p145 = scmp.eq.s32.totalorder %s23, 2
      %p146 = por %p144, %p145
      %p147 = scmp.ne.s32.totalorder %s138, %s139
      %p148 = scmp.eq.s32.totalorder %s23, 0
      %p149 = por %p147, %p148
      %p150 = scmp.ne.s32.totalorder %s138, %s139
      %p151 = scmp.eq.s32.totalorder %s24, 2
      %p152 = por %p150, %p151
      %p154 = scmp.ne.s32.totalorder %s139, %s153
      %p155 = scmp.eq.s32.totalorder %s24, 0
      %p156 = por %p154, %p155
      %s158 = sadd.s32 %s157, 1
      %p161 = scmp.eq.s32.totalorder %s18, 2
      %p162 = scmp.ne.s32.totalorder %s157, %s159
      %p163 = scmp.eq.s32.totalorder %s18, 0
      %p164 = por %p162, %p163
      %p165 = scmp.ne.s32.totalorder %s157, %s159
      %p166 = scmp.eq.s32.totalorder %s23, 2
      %p167 = por %p165, %p166
      %p168 = scmp.ne.s32.totalorder %s159, %s160
      %p169 = scmp.eq.s32.totalorder %s23, 0
      %p170 = por %p168, %p169
      %p171 = scmp.ne.s32.totalorder %s159, %s160
      %p172 = scmp.eq.s32.totalorder %s24, 2
      %p173 = por %p171, %p172
      %p175 = scmp.ne.s32.totalorder %s160, %s174
      %p176 = scmp.eq.s32.totalorder %s24, 0
      %p177 = por %p175, %p176
      %s178 = ssub.s32 %s18, %s25
      %p179 = scmp.eq.s32.totalorder %s178, 0
      %s181 = sadd.s32 %s180, 1
      %s182 = scalar_select %p179, %s180, %s181
      %p185 = pneg %p179
      %p186 = scmp.eq.s32.totalorder %s18, 2
      %p187 = por %p185, %p186
      %p188 = scmp.ne.s32.totalorder %s180, %s183
      %p189 = scmp.eq.s32.totalorder %s18, 0
      %p190 = por %p188, %p189
      %p191 = scmp.ne.s32.totalorder %s180, %s183
      %p192 = scmp.eq.s32.totalorder %s23, 2
      %p193 = por %p191, %p192
      %p194 = scmp.ne.s32.totalorder %s183, %s184
      %p195 = scmp.eq.s32.totalorder %s23, 0
      %p196 = por %p194, %p195
      %p197 = scmp.ne.s32.totalorder %s183, %s184
      %p198 = scmp.eq.s32.totalorder %s24, 2
      %p199 = por %p197, %p198
      %p201 = scmp.ne.s32.totalorder %s184, %s200
      %p202 = scmp.eq.s32.totalorder %s24, 0
      %p203 = por %p201, %p202
      %p204 = scmp.le.s32.totalorder 1, %s18
      %p205 = scmp.lt.s32.totalorder %s18, 4
      %p206 = pnand %p204, %p205
      %p207 = pneg %p206
      // Predicated region
      $region9: #{tpu_custom_call.1} parent=5 // pred_check
        _
      $region10: #{tpu_custom_call.1} parent=5 // pred_check_branch
        %209 = sbr.rel (%p206) target = $region12
      $region11: #{tpu_custom_call.1} parent=5 // pred_region
        %s210 = ssub.s32 %s18, 1
        // Predicated region
        $region13: #{tpu_custom_call.1} parent=11 // pred_check
          %p211 = pneg %p65
        $region14: #{tpu_custom_call.1} parent=11 // pred_check_branch
          %213 = sbr.rel (%p211) target = $region16
        $region15: #{tpu_custom_call.1} parent=11 // pred_region
          _
        $region16: #{tpu_custom_call.1} parent=11 // pred_fallthru
          _
        // Predicated region
        $region17: #{tpu_custom_call.1} parent=11 // pred_check
          %p214 = pneg %p86
        $region18: #{tpu_custom_call.1} parent=11 // pred_check_branch
          %216 = sbr.rel (%p214) target = $region20
        $region19: #{tpu_custom_call.1} parent=11 // pred_region
          _
        $region20: #{tpu_custom_call.1} parent=11 // pred_fallthru
          _
        // Predicated region
        $region21: #{tpu_custom_call.1} parent=11 // pred_check
          %p217 = pneg %p107
        $region22: #{tpu_custom_call.1} parent=11 // pred_check_branch
          %219 = sbr.rel (%p217) target = $region24
        $region23: #{tpu_custom_call.1} parent=11 // pred_region
          _
        $region24: #{tpu_custom_call.1} parent=11 // pred_fallthru
          _
        // Predicated region
        $region25: #{tpu_custom_call.1} parent=11 // pred_check
          %p220 = pneg %p128
        $region26: #{tpu_custom_call.1} parent=11 // pred_check_branch
          %222 = sbr.rel (%p220) target = $region28
        $region27: #{tpu_custom_call.1} parent=11 // pred_region
          _
        $region28: #{tpu_custom_call.1} parent=11 // pred_fallthru
          _
        // Predicated region
        $region29: #{tpu_custom_call.1} parent=11 // pred_check
          %p223 = pneg %p149
        $region30: #{tpu_custom_call.1} parent=11 // pred_check_branch
          %225 = sbr.rel (%p223) target = $region32
        $region31: #{tpu_custom_call.1} parent=11 // pred_region
          _
        $region32: #{tpu_custom_call.1} parent=11 // pred_fallthru
          _
        // Predicated region
        $region33: #{tpu_custom_call.1} parent=11 // pred_check
          %p226 = pneg %p170
        $region34: #{tpu_custom_call.1} parent=11 // pred_check_branch
          %228 = sbr.rel (%p226) target = $region36
        $region35: #{tpu_custom_call.1} parent=11 // pred_region
          _
        $region36: #{tpu_custom_call.1} parent=11 // pred_fallthru
          _
      $region12: #{tpu_custom_call.1} parent=5 // pred_fallthru
        _
      %p229 = scmp.lt.s32.totalorder %s18, 3
      // Predicated region
      $region37: #{tpu_custom_call.1} parent=5 // pred_check
        %p230 = pneg %p229
      $region38: #{tpu_custom_call.1} parent=5 // pred_check_branch
        %232 = sbr.rel (%p230) target = $region40
      $region39: #{tpu_custom_call.1} parent=5 // pred_region
        // Predicated region
        $region41: #{tpu_custom_call.1} parent=39 // pred_check
          %p233 = pneg %p38
        $region42: #{tpu_custom_call.1} parent=39 // pred_check_branch
          %235 = sbr.rel (%p233) target = $region44
        $region43: #{tpu_custom_call.1} parent=39 // pred_region
          %s236 = sand.u32 %s28, 1
          %s237 = sand.u32 %s28, 1
          %s238 = smul.addr %s237, 16
          %s239 = scalar_lea.vmem [#allocation3], %s238
          %s240 = smul.addr %s18, 8
          %s241 = scalar_lea.vmem %s0, %s240
          // Predicated region
          $region45: #{tpu_custom_call.1} parent=43 // pred_check
            _
          $region46: #{tpu_custom_call.1} parent=43 // pred_check_branch
            %243 = sbr.rel (0) target = $region48
          $region47: #{tpu_custom_call.1} parent=43 // pred_region
            // Predicated region
            $region49: #{tpu_custom_call.1} parent=47 // pred_check
              _
            $region50: #{tpu_custom_call.1} parent=47 // pred_check_branch
              %245 = sbr.rel (0) target = $region52
            $region51: #{tpu_custom_call.1} parent=47 // pred_region
              // Predicated region
              $region64: #{tpu_custom_call.1} parent=51 // pred_check
                _
              $region65: #{tpu_custom_call.1} parent=51 // pred_check_branch
                %262 = sbr.rel (0) target = $region67
              $region66: #{tpu_custom_call.1} parent=51 // pred_region
                loop: start=0, step=1, limit=1
                $region68: #{tpu_custom_call.1} parent=66 // loop_pre_header
                  _
                $region69: #{tpu_custom_call.1} parent=66 // loop_header
                  %s264 = sphi 0, %s268
                  %p265 = scmp.ge.s32.totalorder %s264, 1
                  %s269 = sphi %s241, %s241
                  %s270 = sphi %s239, %s239
                $region70: #{tpu_custom_call.1} parent=66 // loop_header_branch
                  %267 = sbr.rel (%p265) target = $region74
                $region71: #{tpu_custom_call.1} parent=66 // loop_body
                  %v271 = vld [vmem:[%s269] sm:$0xff]
                  %272 = vst [vmem:[%s270] sm:$0xff] %v271
                  %v273 = vld [vmem:[%s269 + $0x18] sm:$0xff]
                  %274 = vst [vmem:[%s270 + $0x8] sm:$0xff] %v273
                $region72: #{tpu_custom_call.1} parent=66 // loop_footer
                  %s268 = sadd.s32 1, %s264
                $region73: #{tpu_custom_call.1} parent=66 // loop_footer_branch
                  %263 = sbr.rel target = $region69
                $region74: #{tpu_custom_call.1} parent=66 // loop_exit
                  _
              $region67: #{tpu_custom_call.1} parent=51 // pred_fallthru
                _
              // Predicated region
              $region75: #{tpu_custom_call.1} parent=51 // pred_check
                _
              $region76: #{tpu_custom_call.1} parent=51 // pred_check_branch
                %276 = sbr.rel target = $region78
              $region77: #{tpu_custom_call.1} parent=51 // pred_region
                _
              $region78: #{tpu_custom_call.1} parent=51 // pred_fallthru
                _
            $region52: #{tpu_custom_call.1} parent=47 // pred_fallthru
              _
            // Predicated region
            $region53: #{tpu_custom_call.1} parent=47 // pred_check
              _
            $region54: #{tpu_custom_call.1} parent=47 // pred_check_branch
              %247 = sbr.rel target = $region56
            $region55: #{tpu_custom_call.1} parent=47 // pred_region
              loop: start=0, step=1, limit=1
              $region57: #{tpu_custom_call.1} parent=55 // loop_pre_header
                _
              $region58: #{tpu_custom_call.1} parent=55 // loop_header
                %s250 = sphi 0, %s254
                %p251 = scmp.ge.s32.totalorder %s250, 1
                %s255 = sphi %s241, %s241
                %s256 = sphi %s239, %s239
              $region59: #{tpu_custom_call.1} parent=55 // loop_header_branch
                %253 = sbr.rel (%p251) target = $region63
              $region60: #{tpu_custom_call.1} parent=55 // loop_body
                %v257 = vld [vmem:[%s255] sm:$0xff]
                %258 = vst [vmem:[%s256] sm:$0xff] %v257
                %v259 = vld [vmem:[%s255 + $0x18] sm:$0xff]
                %260 = vst [vmem:[%s256 + $0x8] sm:$0xff] %v259
              $region61: #{tpu_custom_call.1} parent=55 // loop_footer
                %s254 = sadd.s32 1, %s250
              $region62: #{tpu_custom_call.1} parent=55 // loop_footer_branch
                %249 = sbr.rel target = $region58
              $region63: #{tpu_custom_call.1} parent=55 // loop_exit
                _
            $region56: #{tpu_custom_call.1} parent=47 // pred_fallthru
              _
          $region48: #{tpu_custom_call.1} parent=43 // pred_fallthru
            _
          %277 = vnop
        $region44: #{tpu_custom_call.1} parent=39 // pred_fallthru
          _
      $region40: #{tpu_custom_call.1} parent=5 // pred_fallthru
        _
      %p278 = scmp.le.s32.totalorder 1, %s18
      %p279 = scmp.lt.s32.totalorder %s18, 4
      %p280 = pnand %p278, %p279
      %p281 = pneg %p280
      // Predicated region
      $region79: #{tpu_custom_call.1} parent=5 // pred_check
        _
      $region80: #{tpu_custom_call.1} parent=5 // pred_check_branch
        %283 = sbr.rel (%p280) target = $region82
      $region81: #{tpu_custom_call.1} parent=5 // pred_region
        %s284 = ssub.s32 %s18, 1
        %s285 = sand.u32 %s31, 1
        %s286 = sand.u32 %s31, 1
        %s287 = smul.addr %s286, 16
        %s288 = scalar_lea.vmem [#allocation3], %s287
        // Predicated region
        $region83: #{tpu_custom_call.1} parent=81 // pred_check
          %p289 = pneg %p44
        $region84: #{tpu_custom_call.1} parent=81 // pred_check_branch
          %291 = sbr.rel (%p289) target = $region86
        $region85: #{tpu_custom_call.1} parent=81 // pred_region
          _
        $region86: #{tpu_custom_call.1} parent=81 // pred_fallthru
          _
        %s292 = sand.u32 %s31, 1
        %s293 = sand.u32 %s31, 1
        %s294 = smul.addr %s293, 16
        %s295 = scalar_lea.vmem [#allocation3], %s294
        %p296 = pneg %p44
        %p297 = pneg %p41
        %p298 = pneg %p65
        %p299 = pneg %p62
        %p300 = pneg %p86
        %p301 = pneg %p83
        %p302 = pneg %p107
        %p303 = pneg %p104
        %p304 = pneg %p128
        %p305 = pneg %p125
        %p306 = pneg %p149
        %p307 = pneg %p146
        %p308 = pneg %p170
        %p309 = pneg %p167
        %p310 = pneg %p196
        %p311 = pneg %p193
        %s312 = sand.u32 %s183, 1
        %s313 = scalar_lea.sflag [#allocation5], %s312
        %s314 = sand.u32 %s183, 1
        %s315 = scalar_lea.vmem [#allocation4], %s314
        %v316 = vld [vmem:[%s1] sm:$0xff]
        %v317 = vld [vmem:[%s1 + $0x8] sm:$0xff]
        %v318 = vld [vmem:[%s1 + $0x10] sm:$0xff]
        %v319 = vld [vmem:[%s1 + $0x18] sm:$0xff]
        %v320 = vld [vmem:[%s1 + $0x20] sm:$0xff]
        %v321 = vld [vmem:[%s1 + $0x28] sm:$0xff]
        %v322 = vld [vmem:[%s1 + $0x30] sm:$0xff]
        %v323 = vld [vmem:[%s1 + $0x38] sm:$0xff]
        %v324 = vld [vmem:[%s3] sm:$0xff]
        %v325 = vld [vmem:[%s3 + $0x8] sm:$0xff]
        %v326 = vld [vmem:[%s3 + $0x10] sm:$0xff]
        %v327 = vld [vmem:[%s3 + $0x18] sm:$0xff]
        %v328 = vld [vmem:[%s5] sm:$0xff]
        %v329 = vld [vmem:[%s5 + $0x8] sm:$0xff]
        %v330 = vld [vmem:[%s5 + $0x10] sm:$0xff]
        %v331 = vld [vmem:[%s5 + $0x18] sm:$0xff]
        %v332 = vld [vmem:[%s2] sm:$0xff]
        %v333 = vld [vmem:[%s2 + $0x8] sm:$0xff]
        %v334 = vld [vmem:[%s2 + $0x10] sm:$0xff]
        %v335 = vld [vmem:[%s2 + $0x18] sm:$0xff]
        %v336 = vld [vmem:[%s2 + $0x20] sm:$0xff]
        %v337 = vld [vmem:[%s2 + $0x28] sm:$0xff]
        %v338 = vld [vmem:[%s2 + $0x30] sm:$0xff]
        %v339 = vld [vmem:[%s2 + $0x38] sm:$0xff]
        %v340 = vld [vmem:[%s4] sm:$0xff]
        %v341 = vld [vmem:[%s4 + $0x8] sm:$0xff]
        %v342 = vld [vmem:[%s4 + $0x10] sm:$0xff]
        %v343 = vld [vmem:[%s4 + $0x18] sm:$0xff]
        %v344 = vld [vmem:[#allocation2] sm:$0x1]
        %v345 = vld [vmem:[%s288] sm:$0xff]
        %v346 = vld [vmem:[%s288 + $0x8] sm:$0xff]
        %348 = vset.pattern.permute.xlu0 0
        %349 = vperm.xlu0 %348, %v332
        %v350 = vpop.permute.xlu0 %349
        %353 = vset.pattern.permute.xlu0 0
        %354 = vperm.xlu0 %353, %v333
        %v355 = vpop.permute.xlu0 %354
        %358 = vset.pattern.permute.xlu0 0
        %359 = vperm.xlu0 %358, %v334
        %v360 = vpop.permute.xlu0 %359
        %363 = vset.pattern.permute.xlu0 0
        %364 = vperm.xlu0 %363, %v335
        %v365 = vpop.permute.xlu0 %364
        %368 = vset.pattern.permute.xlu0 0
        %369 = vperm.xlu0 %368, %v336
        %v370 = vpop.permute.xlu0 %369
        %373 = vset.pattern.permute.xlu0 0
        %374 = vperm.xlu0 %373, %v337
        %v375 = vpop.permute.xlu0 %374
        %378 = vset.pattern.permute.xlu0 0
        %379 = vperm.xlu0 %378, %v338
        %v380 = vpop.permute.xlu0 %379
        %383 = vset.pattern.permute.xlu0 0
        %384 = vperm.xlu0 %383, %v339
        %v385 = vpop.permute.xlu0 %384
        %vm387 = vcmask 130048
        %v389 = vsel %vm387, %v316, 0
        %v392 = vsel %vm387, %v317, 0
        %v395 = vsel %vm387, %v318, 0
        %v398 = vsel %vm387, %v319, 0
        %v401 = vsel %vm387, %v320, 0
        %v404 = vsel %vm387, %v321, 0
        %v407 = vsel %vm387, %v322, 0
        %v410 = vsel %vm387, %v323, 0
        %412 = vmatprep.subr.mxu0 0.0
        %413 = vmatpush1.msra.mxu0 %v345
        %414 = vmatprep.subr.mxu0 0.0
        %415 = vmatpush1.msra.mxu0 %v346
        %416 = vmatprep.subr.mxu0 0.0
        %417 = vmatpush1.msra.mxu0 0.0
        %418 = vmatprep.subr.mxu0 0.0
        %419 = vmatpush1.msra.mxu0 0.0
        %420 = vmatprep.subr.mxu0 0.0
        %421 = vmatpush1.msra.mxu0 0.0
        %422 = vmatprep.subr.mxu0 0.0
        %423 = vmatpush1.msra.mxu0 0.0
        %424 = vmatprep.subr.mxu0 0.0
        %425 = vmatpush1.msra.mxu0 0.0
        %426 = vmatprep.subr.mxu0 0.0
        %427 = vmatpush1.msra.mxu0 0.0
        %428 = vmatprep.subr.mxu0 0.0
        %429 = vmatpush1.msra.mxu0 0.0
        %430 = vmatprep.subr.mxu0 0.0
        %431 = vmatpush1.msra.mxu0 0.0
        %432 = vmatprep.subr.mxu0 0.0
        %433 = vmatpush1.msra.mxu0 0.0
        %434 = vmatprep.subr.mxu0 0.0
        %435 = vmatpush1.msra.mxu0 0.0
        %436 = vmatprep.subr.mxu0 0.0
        %437 = vmatpush1.msra.mxu0 0.0
        %438 = vmatprep.subr.mxu0 0.0
        %439 = vmatpush1.msra.mxu0 0.0
        %440 = vmatprep.subr.mxu0 0.0
        %441 = vmatpush1.msra.mxu0 0.0
        %442 = vmatprep.subr.mxu0 0.0
        %443 = vmatpush1.msra.mxu0 0.0
        %444 = vmatprep.subr.mxu0 0.0
        %445 = vmatpush1.msra.mxu0 0.0
        %446 = vmatprep.subr.mxu0 0.0
        %447 = vmatpush1.msra.mxu0 0.0
        %448 = vmatprep.subr.mxu0 0.0
        %449 = vmatpush1.msra.mxu0 0.0
        %450 = vmatprep.subr.mxu0 0.0
        %451 = vmatpush1.msra.mxu0 0.0
        %452 = vmatprep.subr.mxu0 0.0
        %453 = vmatpush1.msra.mxu0 0.0
        %454 = vmatprep.subr.mxu0 0.0
        %455 = vmatpush1.msra.mxu0 0.0
        %456 = vmatprep.subr.mxu0 0.0
        %457 = vmatpush1.msra.mxu0 0.0
        %458 = vmatprep.subr.mxu0 0.0
        %459 = vmatpush1.msra.mxu0 0.0
        %460 = vmatprep.subr.mxu0 0.0
        %461 = vmatpush1.msra.mxu0 0.0
        %462 = vmatprep.subr.mxu0 0.0
        %463 = vmatpush1.msra.mxu0 0.0
        %464 = vmatprep.subr.mxu0 0.0
        %465 = vmatpush1.msra.mxu0 0.0
        %466 = vmatprep.subr.mxu0 0.0
        %467 = vmatpush1.msra.mxu0 0.0
        %468 = vmatprep.subr.mxu0 0.0
        %469 = vmatpush1.msra.mxu0 0.0
        %470 = vmatprep.subr.mxu0 0.0
        %471 = vmatpush1.msra.mxu0 0.0
        %472 = vmatprep.subr.mxu0 0.0
        %473 = vmatpush1.msra.mxu0 0.0
        %474 = vmatprep.subr.mxu0 0.0
        %475 = vmatpush1.msra.mxu0 0.0
        %476 = vmatprep.mubr.f32.mxu0 0.0
        %477 = vmatmul.mubr.f32.gmra.mrb[0].mxu0 %v389
        %v478 = vpop.f32.mrb[0].mxu0
        %v479 = vadd.f32 %v350, %v478
        %v480 = vpop.f32.mrb[0].mxu0
        %481 = vmatprep.mubr.f32.mxu0 0.0
        %482 = vmatmul.mubr.f32.gmra.mrb[0].mxu0 %v392
        %v483 = vpop.f32.mrb[0].mxu0
        %v484 = vadd.f32 %v355, %v483
        %v485 = vpop.f32.mrb[0].mxu0
        %486 = vmatprep.mubr.f32.mxu0 0.0
        %487 = vmatmul.mubr.f32.gmra.mrb[0].mxu0 %v395
        %v488 = vpop.f32.mrb[0].mxu0
        %v489 = vadd.f32 %v360, %v488
        %v490 = vpop.f32.mrb[0].mxu0
        %491 = vmatprep.mubr.f32.mxu0 0.0
        %492 = vmatmul.mubr.f32.gmra.mrb[0].mxu0 %v398
        %v493 = vpop.f32.mrb[0].mxu0
        %v494 = vadd.f32 %v365, %v493
        %v495 = vpop.f32.mrb[0].mxu0
        %496 = vmatprep.mubr.f32.mxu0 0.0
        %497 = vmatmul.mubr.f32.gmra.mrb[0].mxu0 %v401
        %v498 = vpop.f32.mrb[0].mxu0
        %v499 = vadd.f32 %v370, %v498
        %v500 = vpop.f32.mrb[0].mxu0
        %501 = vmatprep.mubr.f32.mxu0 0.0
        %502 = vmatmul.mubr.f32.gmra.mrb[0].mxu0 %v404
        %v503 = vpop.f32.mrb[0].mxu0
        %v504 = vadd.f32 %v375, %v503
        %v505 = vpop.f32.mrb[0].mxu0
        %506 = vmatprep.mubr.f32.mxu0 0.0
        %507 = vmatmul.mubr.f32.gmra.mrb[0].mxu0 %v407
        %v508 = vpop.f32.mrb[0].mxu0
        %v509 = vadd.f32 %v380, %v508
        %v510 = vpop.f32.mrb[0].mxu0
        %511 = vmatprep.mubr.f32.mxu0 0.0
        %512 = vmatmul.mubr.f32.gmra.mrb[0].mxu0 %v410
        %v513 = vpop.f32.mrb[0].mxu0
        %v514 = vadd.f32 %v385, %v513
        %v515 = vpop.f32.mrb[0].mxu0
        %516 = vdwg.mxu0
        %v517 = vmax.f32 %v479, 0.0
        %v518 = vmax.f32 %v484, 0.0
        %v519 = vmax.f32 %v489, 0.0
        %v520 = vmax.f32 %v494, 0.0
        %v521 = vmax.f32 %v499, 0.0
        %v522 = vmax.f32 %v504, 0.0
        %v523 = vmax.f32 %v509, 0.0
        %v524 = vmax.f32 %v514, 0.0
        %526 = vset.pattern.permute.xlu0 0
        %527 = vperm.xlu0 %526, %v340
        %v528 = vpop.permute.xlu0 %527
        %531 = vset.pattern.permute.xlu0 0
        %532 = vperm.xlu0 %531, %v341
        %v533 = vpop.permute.xlu0 %532
        %536 = vset.pattern.permute.xlu0 0
        %537 = vperm.xlu0 %536, %v342
        %v538 = vpop.permute.xlu0 %537
        %541 = vset.pattern.permute.xlu0 0
        %542 = vperm.xlu0 %541, %v343
        %v543 = vpop.permute.xlu0 %542
        %vm545 = vcmask 523264
        %v547 = vsel %vm545, %v324, 0
        %v550 = vsel %vm545, %v325, 0
        %v553 = vsel %vm545, %v326, 0
        %v556 = vsel %vm545, %v327, 0
        %558 = vmatprep.subr.mxu0 0.0
        %559 = vmatpush1.msra.mxu0 %v517
        %560 = vmatprep.subr.mxu0 0.0
        %561 = vmatpush1.msra.mxu0 %v518
        %562 = vmatprep.subr.mxu0 0.0
        %563 = vmatpush1.msra.mxu0 %v519
        %564 = vmatprep.subr.mxu0 0.0
        %565 = vmatpush1.msra.mxu0 %v520
        %566 = vmatprep.subr.mxu0 0.0
        %567 = vmatpush1.msra.mxu0 %v521
        %568 = vmatprep.subr.mxu0 0.0
        %569 = vmatpush1.msra.mxu0 %v522
        %570 = vmatprep.subr.mxu0 0.0
        %571 = vmatpush1.msra.mxu0 %v523
        %572 = vmatprep.subr.mxu0 0.0
        %573 = vmatpush1.msra.mxu0 %v524
        %574 = vmatprep.subr.mxu0 0.0
        %575 = vmatpush1.msra.mxu0 0.0
        %576 = vmatprep.subr.mxu0 0.0
        %577 = vmatpush1.msra.mxu0 0.0
        %578 = vmatprep.subr.mxu0 0.0
        %579 = vmatpush1.msra.mxu0 0.0
        %580 = vmatprep.subr.mxu0 0.0
        %581 = vmatpush1.msra.mxu0 0.0
        %582 = vmatprep.subr.mxu0 0.0
        %583 = vmatpush1.msra.mxu0 0.0
        %584 = vmatprep.subr.mxu0 0.0
        %585 = vmatpush1.msra.mxu0 0.0
        %586 = vmatprep.subr.mxu0 0.0
        %587 = vmatpush1.msra.mxu0 0.0
        %588 = vmatprep.subr.mxu0 0.0
        %589 = vmatpush1.msra.mxu0 0.0
        %590 = vmatprep.subr.mxu0 0.0
        %591 = vmatpush1.msra.mxu0 0.0
        %592 = vmatprep.subr.mxu0 0.0
        %593 = vmatpush1.msra.mxu0 0.0
        %594 = vmatprep.subr.mxu0 0.0
        %595 = vmatpush1.msra.mxu0 0.0
        %596 = vmatprep.subr.mxu0 0.0
        %597 = vmatpush1.msra.mxu0 0.0
        %598 = vmatprep.subr.mxu0 0.0
        %599 = vmatpush1.msra.mxu0 0.0
        %600 = vmatprep.subr.mxu0 0.0
        %601 = vmatpush1.msra.mxu0 0.0
        %602 = vmatprep.subr.mxu0 0.0
        %603 = vmatpush1.msra.mxu0 0.0
        %604 = vmatprep.subr.mxu0 0.0
        %605 = vmatpush1.msra.mxu0 0.0
        %606 = vmatprep.subr.mxu0 0.0
        %607 = vmatpush1.msra.mxu0 0.0
        %608 = vmatprep.subr.mxu0 0.0
        %609 = vmatpush1.msra.mxu0 0.0
        %610 = vmatprep.subr.mxu0 0.0
        %611 = vmatpush1.msra.mxu0 0.0
        %612 = vmatprep.subr.mxu0 0.0
        %613 = vmatpush1.msra.mxu0 0.0
        %614 = vmatprep.subr.mxu0 0.0
        %615 = vmatpush1.msra.mxu0 0.0
        %616 = vmatprep.subr.mxu0 0.0
        %617 = vmatpush1.msra.mxu0 0.0
        %618 = vmatprep.subr.mxu0 0.0
        %619 = vmatpush1.msra.mxu0 0.0
        %620 = vmatprep.subr.mxu0 0.0
        %621 = vmatpush1.msra.mxu0 0.0
        %622 = vmatprep.mubr.f32.mxu0 0.0
        %623 = vmatmul.mubr.f32.gmra.mrb[0].mxu0 %v547
        %v624 = vpop.f32.mrb[0].mxu0
        %v625 = vadd.f32 %v528, %v624
        %v626 = vpop.f32.mrb[0].mxu0
        %627 = vmatprep.mubr.f32.mxu0 0.0
        %628 = vmatmul.mubr.f32.gmra.mrb[0].mxu0 %v550
        %v629 = vpop.f32.mrb[0].mxu0
        %v630 = vadd.f32 %v533, %v629
        %v631 = vpop.f32.mrb[0].mxu0
        %632 = vmatprep.mubr.f32.mxu0 0.0
        %633 = vmatmul.mubr.f32.gmra.mrb[0].mxu0 %v553
        %v634 = vpop.f32.mrb[0].mxu0
        %v635 = vadd.f32 %v538, %v634
        %v636 = vpop.f32.mrb[0].mxu0
        %637 = vmatprep.mubr.f32.mxu0 0.0
        %638 = vmatmul.mubr.f32.gmra.mrb[0].mxu0 %v556
        %v639 = vpop.f32.mrb[0].mxu0
        %v640 = vadd.f32 %v543, %v639
        %v641 = vpop.f32.mrb[0].mxu0
        %642 = vdwg.mxu0
        %v643 = vmax.f32 %v625, 0.0
        %v644 = vmax.f32 %v630, 0.0
        %v645 = vmax.f32 %v635, 0.0
        %v646 = vmax.f32 %v640, 0.0
        %648 = vset.pattern.permute.xlu0 0
        %649 = vperm.xlu0 %648, %v328
        %v650 = vpop.permute.xlu0 %649
        %653 = vset.pattern.permute.xlu0 0
        %654 = vperm.xlu0 %653, %v329
        %v655 = vpop.permute.xlu0 %654
        %658 = vset.pattern.permute.xlu0 0
        %659 = vperm.xlu0 %658, %v330
        %v660 = vpop.permute.xlu0 %659
        %663 = vset.pattern.permute.xlu0 0
        %664 = vperm.xlu0 %663, %v331
        %v665 = vpop.permute.xlu0 %664
        %v667 = vmul.f32 %v650, %v643
        %v668 = vmul.f32 %v655, %v644
        %v669 = vmul.f32 %v660, %v645
        %v670 = vmul.f32 %v665, %v646
        %v671 = vadd.f32 %v667, %v668
        %v672 = vadd.f32 %v671, %v669
        %v673 = vadd.f32 %v672, %v670
        %v674 = vrot.slane %v673, 4
        %v675 = vadd.f32 %v673, %v674
        %v676 = vrot.slane %v675, 2
        %v677 = vadd.f32 %v675, %v676
        %v678 = vrot.slane %v677, 1
        %v679 = vadd.f32 %v677, %v678
        %681 = vset.pattern.permute.xlu0 0
        %682 = vperm.xlu0 %681, %v344
        %v683 = vpop.permute.xlu0 %682
        %v685 = vlaneseq
        %v686 = vshrl.u32 %v685, 7
        %v687 = vsub.s32 0, %v686
        %v688 = vrot.slane %v683, %v687
        %v689 = vadd.f32 %v679, %v688
        %v690 = vxor.u32 %v689, 2147483648
        %v691 = vmul.f32 %v690, 1.442695
        %v692 = vpow.pop %v691
        %v693 = vadd.f32 %v692, 1.0
        %v694 = vrcp.pop %v693
        %v695 = vmul.f32 1.0, %v694
        %696 = vst [vmem:[%s315] sm:$0x1] %v695
        %s697 = sand.u32 %s183, 1
        %s698 = scalar_lea.sflag [#allocation5], %s697
        %s699 = sand.u32 %s183, 1
        %s700 = scalar_lea.vmem [#allocation4], %s699
        // Predicated region
        $region87: #{tpu_custom_call.1} parent=81 // pred_check
          %p701 = pneg %p193
        $region88: #{tpu_custom_call.1} parent=81 // pred_check_branch
          %703 = sbr.rel (%p701) target = $region90
        $region89: #{tpu_custom_call.1} parent=81 // pred_region
          %s705 = ssub.s32 16, 16
          %706 = vsyncadd %s698, %s705
          %s707 = smul.addr %s23, 16
          %s708 = scalar_lea.hbm %s7, %s707
          %s710 = sshll.u32 %s700, 4
          %s711 = int_to_ptr.vmem [resolvable:$true] %s710
          %713 = dma.vmem_to_hbm [thread:$0]  %s711, 16, %s708, %s698
        $region90: #{tpu_custom_call.1} parent=81 // pred_fallthru
          _
      $region82: #{tpu_custom_call.1} parent=5 // pred_fallthru
        _
      %p714 = scmp.le.s32.totalorder 2, %s18
      // Predicated region
      $region91: #{tpu_custom_call.1} parent=5 // pred_check
        %p715 = pneg %p714
      $region92: #{tpu_custom_call.1} parent=5 // pred_check_branch
        %717 = sbr.rel (%p715) target = $region94
      $region93: #{tpu_custom_call.1} parent=5 // pred_region
        %s718 = ssub.s32 %s18, 2
        // Predicated region
        $region95: #{tpu_custom_call.1} parent=93 // pred_check
          %p719 = pneg %p199
        $region96: #{tpu_custom_call.1} parent=93 // pred_check_branch
          %721 = sbr.rel (%p719) target = $region98
        $region97: #{tpu_custom_call.1} parent=93 // pred_region
          %s722 = sand.u32 %s184, 1
          %s723 = scalar_lea.sflag [#allocation5], %s722
          %s724 = sand.u32 %s184, 1
          %s725 = scalar_lea.vmem [#allocation4], %s724
          %726 = dma.done %s723, 16
        $region98: #{tpu_custom_call.1} parent=93 // pred_fallthru
          _
      $region94: #{tpu_custom_call.1} parent=5 // pred_fallthru
        _
    $region6: #{tpu_custom_call.1} parent=1 // loop_footer
      %s22 = sadd.s32 1, %s18
    $region7: #{tpu_custom_call.1} parent=1 // loop_footer_branch
      %17 = sbr.rel target = $region3
    $region8: #{tpu_custom_call.1} parent=1 // loop_exit
      _
    %727 = vsyncpa [#allocation5], 1
    %s728 = scalar_lea.sflag [#allocation5], 1
    %729 = vsyncpa %s728, 1

</llo_original>
